<compile_context>
chip_gen: v6e
topology: v6e:2x2x1
jax: 0.10.0
libtpu: 0.0.40
codegen_flags: <defaults>
</compile_context>

<pallas_src>
import jax
import jax.numpy as jnp
from jax.experimental import pallas as pl
from jax.experimental.pallas import tpu as pltpu


def _identity_kernel(x_ref, o_ref):
    # Pure tile copy: VMEM in -> VMEM out, DMA'd by the BlockSpec pipeline.
    o_ref[...] = x_ref[...]


def _round_up(n, m):
    return ((n + m - 1) // m) * m


def identity_pallas(x, *, lanes=512, max_tile_rows=1024):
    """Identity forward: returns x, materialized through a tiled Pallas copy."""
    orig_shape = x.shape
    flat = x.reshape(-1)
    total = flat.shape[0]

    # Lane-dense 2-D layout: rows multiple of 8 (sublanes), lanes multiple of 128.
    rows = pl.cdiv(total, lanes)
    tile_rows = min(max_tile_rows, _round_up(rows, 8))
    rows_pad = _round_up(rows, tile_rows)
    total_pad = rows_pad * lanes
    if total_pad != total:
        flat = jnp.pad(flat, (0, total_pad - total))
    x2 = flat.reshape(rows_pad, lanes)

    grid = (rows_pad // tile_rows,)

    out = pl.pallas_call(
        _identity_kernel,
        out_shape=jax.ShapeDtypeStruct((rows_pad, lanes), x.dtype),
        grid_spec=pltpu.PrefetchScalarGridSpec(
            num_scalar_prefetch=0,
            grid=grid,
            in_specs=[pl.BlockSpec((tile_rows, lanes), lambda i: (i, 0))],
            out_specs=pl.BlockSpec((tile_rows, lanes), lambda i: (i, 0)),
        ),
        compiler_params=pltpu.CompilerParams(
            dimension_semantics=("parallel",),
        ),
    )(x2)

    return out.reshape(-1)[:total].reshape(orig_shape)


if __name__ == "__main__":
    key = jax.random.PRNGKey(0)
    x = jax.random.normal(key, (2, 4, 16, 16), dtype=jnp.float32)

    out = jax.block_until_ready(identity_pallas(x))

    assert out.shape == x.shape and out.dtype == x.dtype
    assert jnp.array_equal(out, x), "Identity kernel output does not match input"

    print("KERNEL_OK")
</pallas_src>

<mosaic_0001>
module attributes {stable_mosaic.version = 11 : i64} {
  func.func @_identity_kernel(%arg0: i32, %arg1: memref<8x512xf32, #tpu.memory_space<vmem>>, %arg2: memref<8x512xf32, #tpu.memory_space<vmem>>) attributes {dimension_semantics = [#tpu.dimension_semantics<parallel>], iteration_bounds = array<i64: 1>, scalar_prefetch = 0 : i64, scratch_operands = 0 : i64, tpu.core_type = #tpu.core_type<tc>, window_params = [{transform_indices = @transform_0, window_bounds = array<i64: 8, 512>}, {transform_indices = @transform_1, window_bounds = array<i64: 8, 512>}]} {
    %c0 = arith.constant 0 : index
    %c0_0 = arith.constant 0 : index
    %0 = vector.load %arg1[%c0, %c0_0] : memref<8x512xf32, #tpu.memory_space<vmem>>, vector<8x512xf32>
    %c0_1 = arith.constant 0 : index
    %c0_2 = arith.constant 0 : index
    %1 = vector.load %arg2[%c0_1, %c0_2] : memref<8x512xf32, #tpu.memory_space<vmem>>, vector<8x512xf32>
    tpu.vector_store %arg2[%c0_1, %c0_2], %0 {strides = array<i32>} : memref<8x512xf32, #tpu.memory_space<vmem>>, vector<8x512xf32>,
    return
  }
  func.func @transform_0(%arg0: i32) -> (i32, i32) {
    %c0_i32 = arith.constant 0 : i32
    %c0_i32_0 = arith.constant 0 : i32
    return %arg0, %c0_i32 : i32, i32
  }
  func.func @transform_1(%arg0: i32) -> (i32, i32) {
    %c0_i32 = arith.constant 0 : i32
    %c0_i32_0 = arith.constant 0 : i32
    return %arg0, %c0_i32 : i32, i32
  }
}

</mosaic_0001>

<llo_original>
// kernel: tpu_custom_call.1
$region0: #{tpu_custom_call.1}
  #allocation0 [shape = 'u32[]', space=smem, size = 0x4, offset = 0x4, fixed_abs, tag = 'smem constant byte address 0x4 - core index']
  #allocation1 [shape = 'u32[144,128]{1,0:T(1,128)}', space=vmem, size = 0x12000, scoped, tag = 'internal scratch']
  %s0 = inlined_call_operand.hbm [shape: f32[8,512], index: 0, kind: input, shape index: {}]
  %s1 = inlined_call_operand.hbm [shape: f32[8,512], index: 1, kind: output, shape index: {}]
  %s2 = sld [smem:[#allocation0]]
  $region18: #{tpu_custom_call.1} parent=0
    _
  %s4 = ssub.s32 1, %s2
  %s5 = scalar_select 0, %s4, %s2
  $region1: #{tpu_custom_call.1} parent=0
    #allocation2 [shape = 'u8[16384]{0}', space=vmem, size = 0x4000, scoped, tag = 'input window, operand 0, single buffered']
    #allocation3 [shape = 's32[1]{0}', space=sflag, size = 0x4, scoped, tag = 'scoped memory for tpu_custom_call.1']
    #allocation4 [shape = 's32[1]{0}', space=sflag, size = 0x4, scoped, tag = 'scoped memory for tpu_custom_call.1']
    #allocation5 [shape = 'u8[16384]{0}', space=vmem, size = 0x4000, scoped, tag = 'output window, operand 0, single buffered']
    %6 = vsyncpa [#allocation3], 0
    %7 = vsyncpa [#allocation4], 0
    // Predicated region
    $region2: #{tpu_custom_call.1} parent=1 // pred_check
      _
    $region3: #{tpu_custom_call.1} parent=1 // pred_check_branch
      %9 = sbr.rel (0) target = $region5
    $region4: #{tpu_custom_call.1} parent=1 // pred_region
      %s11 = ssub.s32 512, 512
      %12 = vsyncadd [#allocation3], %s11
      %s14 = sshll.u32 [#allocation2], 4
      %s15 = int_to_ptr.vmem [resolvable:$true] %s14
      %17 = dma.hbm_to_vmem [thread:$0]  %s0, 512, %s15, [#allocation3]
    $region5: #{tpu_custom_call.1} parent=1 // pred_fallthru
      _
    // Predicated region
    $region6: #{tpu_custom_call.1} parent=1 // pred_check
      _
    $region7: #{tpu_custom_call.1} parent=1 // pred_check_branch
      %19 = sbr.rel (0) target = $region9
    $region8: #{tpu_custom_call.1} parent=1 // pred_region
      %20 = dma.done [#allocation3], 512
    $region9: #{tpu_custom_call.1} parent=1 // pred_fallthru
      _
    %v21 = vld [vmem:[#allocation2] sm:$0xff]
    %v22 = vld [vmem:[#allocation2 + $0x8] sm:$0xff]
    %v23 = vld [vmem:[#allocation2 + $0x10] sm:$0xff]
    %v24 = vld [vmem:[#allocation2 + $0x18] sm:$0xff]
    %25 = vst [vmem:[#allocation5] sm:$0xff] %v21
    %26 = vst [vmem:[#allocation5 + $0x8] sm:$0xff] %v22
    %27 = vst [vmem:[#allocation5 + $0x10] sm:$0xff] %v23
    %28 = vst [vmem:[#allocation5 + $0x18] sm:$0xff] %v24
    // Predicated region
    $region10: #{tpu_custom_call.1} parent=1 // pred_check
      _
    $region11: #{tpu_custom_call.1} parent=1 // pred_check_branch
      %30 = sbr.rel (0) target = $region13
    $region12: #{tpu_custom_call.1} parent=1 // pred_region
      %s32 = ssub.s32 512, 512
      %33 = vsyncadd [#allocation4], %s32
      %s35 = sshll.u32 [#allocation5], 4
      %s36 = int_to_ptr.vmem [resolvable:$true] %s35
      %38 = dma.vmem_to_hbm [thread:$0]  %s36, 512, %s1, [#allocation4]
    $region13: #{tpu_custom_call.1} parent=1 // pred_fallthru
      _
    // Predicated region
    $region14: #{tpu_custom_call.1} parent=1 // pred_check
      _
    $region15: #{tpu_custom_call.1} parent=1 // pred_check_branch
      %40 = sbr.rel (0) target = $region17
    $region16: #{tpu_custom_call.1} parent=1 // pred_region
      %41 = dma.done [#allocation4], 512
    $region17: #{tpu_custom_call.1} parent=1 // pred_fallthru
      _
    %42 = vsyncpa [#allocation3], 1
    %43 = vsyncpa [#allocation4], 1

</llo_original>
